<compile_context>
chip_gen: v7x
topology: tpu7x:2x2x1
jax: 0.10.0
libtpu: 0.0.40
codegen_flags: <defaults>
</compile_context>

<pallas_src>
import math

import jax
import jax.numpy as jnp
from jax.experimental import pallas as pl
from jax.experimental.pallas import tpu as pltpu

_OUT_PAD = 128   # lane-dense output width; real output is 2 columns
_LANE = 128
_SUBLANE = 8


def _round_up(n, m):
    return -(-n // m) * m


def _mlp_head_kernel(x_ref, w1_ref, b1_ref, w2_ref, b2_ref, w3_ref, b3_ref, o_ref):
    # bf16 operands into the MXU, f32 accumulate; activations stay in f32.
    x = x_ref[...].astype(jnp.bfloat16)

    h1 = jnp.dot(x, w1_ref[...], preferred_element_type=jnp.float32) + b1_ref[...]
    h1 = jnp.maximum(h1, 0.0).astype(jnp.bfloat16)

    h2 = jnp.dot(h1, w2_ref[...], preferred_element_type=jnp.float32) + b2_ref[...]
    h2 = jnp.maximum(h2, 0.0).astype(jnp.bfloat16)

    logits = jnp.dot(h2, w3_ref[...], preferred_element_type=jnp.float32) + b3_ref[...]
    o_ref[...] = jax.nn.sigmoid(logits).astype(o_ref.dtype)   # full 128-lane store


def _pad_to(a, shape):
    pads = [(0, t - s) for s, t in zip(a.shape, shape)]
    if all(p == (0, 0) for p in pads):
        return a
    return jnp.pad(a, pads)


def _stack_heads(params, Hp):
    """Zero-pad each head's weights to padded shapes and stack on a head axis."""
    vh, ah = params["visual"], params["audio"]
    D, H = vh["w1"].shape

    def stk(get, shape, dtype):
        return jnp.stack([_pad_to(get(vh), shape),
                          _pad_to(get(ah), shape)]).astype(dtype)

    w1 = stk(lambda h: h["w1"], (D, Hp), jnp.bfloat16)                      # (2, D, Hp)
    b1 = stk(lambda h: h["b1"].reshape(1, H), (1, Hp), jnp.float32)         # (2, 1, Hp)
    w2 = stk(lambda h: h["w2"], (Hp, Hp), jnp.bfloat16)                     # (2, Hp, Hp)
    b2 = stk(lambda h: h["b2"].reshape(1, H), (1, Hp), jnp.float32)         # (2, 1, Hp)
    w3 = stk(lambda h: h["w3"], (Hp, _OUT_PAD), jnp.bfloat16)               # (2, Hp, 128)
    b3 = stk(lambda h: h["b3"].reshape(1, -1), (1, _OUT_PAD), jnp.float32)  # (2, 1, 128)
    return w1, b1, w2, b2, w3, b3


def audio_visual_reg_head_forward(x, params, num_v_queries, num_a_queries, *, row_tile=512):
    """Pallas implementation of AudioVisualRegHead.forward.

    x: (B, S, d_model); params: {"visual": {...}, "audio": {...}}.
    Returns (v_action_preds (B*Qv, 2), a_action_preds (B*Qa, 2)).
    """
    B, S, D = x.shape
    a_start = S - num_a_queries if num_a_queries > 0 else S
    v_start = a_start - num_v_queries

    Nv = B * num_v_queries
    Na = B * num_a_queries
    if Nv == 0 and Na == 0:
        return jnp.zeros((0, 2), jnp.float32), jnp.zeros((0, 2), jnp.float32)

    # TODO(synk): fold these query slices into the x BlockSpec (element-offset
    # indexing on the S axis) to avoid the extra XLA slice pass over HBM.
    xv = x[:, v_start:a_start, :].reshape(Nv, D)
    xa = x[:, a_start:S, :].reshape(Na, D)

    H = params["visual"]["w1"].shape[1]
    Hp = _round_up(H, _LANE)

    # Row tiling: biggest tile <= row_tile, multiple of 8 sublanes; both heads
    # are padded to the same row count so they share one grid.
    Nmax = max(Nv, Na)
    tile = min(row_tile, _round_up(Nmax, _SUBLANE))
    tile = max(_SUBLANE, (tile // _SUBLANE) * _SUBLANE)
    Np = tile * pl.cdiv(Nmax, tile)

    xq = jnp.stack([_pad_to(xv, (Np, D)), _pad_to(xa, (Np, D))])   # (2, Np, D)
    w1, b1, w2, b2, w3, b3 = _stack_heads(params, Hp)

    grid = (2, Np // tile)   # (head, row tiles); weights resident across inner axis

    out = pl.pallas_call(
        _mlp_head_kernel,
        out_shape=jax.ShapeDtypeStruct((2, Np, _OUT_PAD), jnp.float32),
        grid_spec=pltpu.PrefetchScalarGridSpec(
            num_scalar_prefetch=0,
            grid=grid,
            in_specs=[
                pl.BlockSpec((None, tile, D), lambda h, i: (h, i, 0)),        # x rows
                pl.BlockSpec((None, D, Hp), lambda h, i: (h, 0, 0)),          # w1
                pl.BlockSpec((None, 1, Hp), lambda h, i: (h, 0, 0)),          # b1
                pl.BlockSpec((None, Hp, Hp), lambda h, i: (h, 0, 0)),         # w2
                pl.BlockSpec((None, 1, Hp), lambda h, i: (h, 0, 0)),          # b2
                pl.BlockSpec((None, Hp, _OUT_PAD), lambda h, i: (h, 0, 0)),   # w3
                pl.BlockSpec((None, 1, _OUT_PAD), lambda h, i: (h, 0, 0)),    # b3
            ],
            out_specs=pl.BlockSpec((None, tile, _OUT_PAD), lambda h, i: (h, i, 0)),
        ),
        compiler_params=pltpu.CompilerParams(
            dimension_semantics=("parallel", "parallel"),
            vmem_limit_bytes=48 * 1024 * 1024,
        ),
    )(xq, w1, b1, w2, b2, w3, b3)

    # Un-pad: drop padded rows and the 126 zero-bias sigmoid(0)=0.5 columns.
    return out[0, :Nv, :2], out[1, :Na, :2]


# ---------------------------------------------------------------------------
# Params + plain-JAX reference (PyTorch nn.Linear default init).
# ---------------------------------------------------------------------------

def _init_linear(key, fan_in, fan_out):
    bound = 1.0 / math.sqrt(fan_in)
    kw, kb = jax.random.split(key)
    w = jax.random.uniform(kw, (fan_in, fan_out), jnp.float32, -bound, bound)
    b = jax.random.uniform(kb, (fan_out,), jnp.float32, -bound, bound)
    return w, b


def init_head_params(d_model, key):
    h = d_model // 2
    k1, k2, k3 = jax.random.split(key, 3)
    w1, b1 = _init_linear(k1, d_model, h)
    w2, b2 = _init_linear(k2, h, h)
    w3, b3 = _init_linear(k3, h, 2)
    return {"w1": w1, "b1": b1, "w2": w2, "b2": b2, "w3": w3, "b3": b3}


def _mlp_ref(xq, head):
    h1 = jnp.maximum(xq @ head["w1"] + head["b1"], 0.0)
    h2 = jnp.maximum(h1 @ head["w2"] + head["b2"], 0.0)
    return jax.nn.sigmoid(h2 @ head["w3"] + head["b3"])


def reference_forward(x, params, num_v_queries, num_a_queries):
    B, S, D = x.shape
    a_start = S - num_a_queries if num_a_queries > 0 else S
    v_start = a_start - num_v_queries
    xv = x[:, v_start:a_start, :].reshape(B * num_v_queries, D)
    xa = x[:, a_start:S, :].reshape(B * num_a_queries, D)
    return _mlp_ref(xv, params["visual"]), _mlp_ref(xa, params["audio"])


if __name__ == "__main__":
    key = jax.random.PRNGKey(0)
    k_x, k_v, k_a = jax.random.split(key, 3)

    B, S, d_model = 2, 8, 32
    num_v_queries, num_a_queries = 3, 4

    x = jax.random.normal(k_x, (B, S, d_model), dtype=jnp.float32)
    params = {
        "visual": init_head_params(d_model, k_v),
        "audio": init_head_params(d_model, k_a),
    }

    v_preds, a_preds = audio_visual_reg_head_forward(
        x, params, num_v_queries, num_a_queries)
    v_preds, a_preds = jax.block_until_ready((v_preds, a_preds))

    assert v_preds.shape == (B * num_v_queries, 2), v_preds.shape
    assert a_preds.shape == (B * num_a_queries, 2), a_preds.shape

    ref_v, ref_a = reference_forward(x, params, num_v_queries, num_a_queries)
    # bf16 MXU operands (f32 accumulate) -> compare at bf16-level tolerance.
    assert jnp.allclose(v_preds, ref_v, atol=2e-2, rtol=2e-2), \
        float(jnp.max(jnp.abs(v_preds - ref_v)))
    assert jnp.allclose(a_preds, ref_a, atol=2e-2, rtol=2e-2), \
        float(jnp.max(jnp.abs(a_preds - ref_a)))

    print("KERNEL_OK")
</pallas_src>

<mosaic_0001>
module attributes {stable_mosaic.version = 11 : i64} {
  func.func @_mlp_head_kernel(%arg0: i32, %arg1: i32, %arg2: memref<1x8x32xf32, #tpu.memory_space<vmem>>, %arg3: memref<1x32x128xbf16, #tpu.memory_space<vmem>>, %arg4: memref<1x1x128xf32, #tpu.memory_space<vmem>>, %arg5: memref<1x128x128xbf16, #tpu.memory_space<vmem>>, %arg6: memref<1x1x128xf32, #tpu.memory_space<vmem>>, %arg7: memref<1x128x128xbf16, #tpu.memory_space<vmem>>, %arg8: memref<1x1x128xf32, #tpu.memory_space<vmem>>, %arg9: memref<1x8x128xf32, #tpu.memory_space<vmem>>) attributes {dimension_semantics = [#tpu.dimension_semantics<parallel>, #tpu.dimension_semantics<parallel>], iteration_bounds = array<i64: 2, 1>, scalar_prefetch = 0 : i64, scratch_operands = 0 : i64, tpu.core_type = #tpu.core_type<tc>, window_params = [{transform_indices = @transform_0, window_bounds = array<i64: 1, 8, 32>}, {transform_indices = @transform_1, window_bounds = array<i64: 1, 32, 128>}, {transform_indices = @transform_2, window_bounds = array<i64: 1, 1, 128>}, {transform_indices = @transform_3, window_bounds = array<i64: 1, 128, 128>}, {transform_indices = @transform_4, window_bounds = array<i64: 1, 1, 128>}, {transform_indices = @transform_5, window_bounds = array<i64: 1, 128, 128>}, {transform_indices = @transform_6, window_bounds = array<i64: 1, 1, 128>}, {transform_indices = @transform_7, window_bounds = array<i64: 1, 8, 128>}]} {
    %c0 = arith.constant 0 : index
    %c0_0 = arith.constant 0 : index
    %c0_1 = arith.constant 0 : index
    %0 = vector.load %arg2[%c0, %c0_0, %c0_1] : memref<1x8x32xf32, #tpu.memory_space<vmem>>, vector<1x8x32xf32>
    %1 = vector.shape_cast %0 : vector<1x8x32xf32> to vector<8x32xf32>
    %2 = arith.truncf %1 : vector<8x32xf32> to vector<8x32xbf16>
    %c0_2 = arith.constant 0 : index
    %c0_3 = arith.constant 0 : index
    %c0_4 = arith.constant 0 : index
    %3 = vector.load %arg3[%c0_2, %c0_3, %c0_4] : memref<1x32x128xbf16, #tpu.memory_space<vmem>>, vector<1x32x128xbf16>
    %4 = vector.shape_cast %3 : vector<1x32x128xbf16> to vector<32x128xbf16>
    %cst = arith.constant dense<0.000000e+00> : vector<8x128xf32>
    %5 = tpu.matmul %2, %4, %cst {dimension_numbers = #tpu.dot_dimension_numbers<[1], [0], [0], [1], [0, 0, 1, 1], [], []>} : vector<8x32xbf16>, vector<32x128xbf16>, vector<8x128xf32> -> vector<8x128xf32>
    %c0_5 = arith.constant 0 : index
    %c0_6 = arith.constant 0 : index
    %c0_7 = arith.constant 0 : index
    %6 = vector.load %arg4[%c0_5, %c0_6, %c0_7] : memref<1x1x128xf32, #tpu.memory_space<vmem>>, vector<1x1x128xf32>
    %7 = vector.shape_cast %6 : vector<1x1x128xf32> to vector<1x128xf32>
    %8 = vector.broadcast %7 : vector<1x128xf32> to vector<8x128xf32>
    %9 = arith.addf %5, %8 : vector<8x128xf32>
    %cst_8 = arith.constant 0.000000e+00 : f32
    %10 = vector.broadcast %cst_8 : f32 to vector<8x128xf32>
    %11 = arith.maximumf %9, %10 : vector<8x128xf32>
    %12 = arith.truncf %11 : vector<8x128xf32> to vector<8x128xbf16>
    %c0_9 = arith.constant 0 : index
    %c0_10 = arith.constant 0 : index
    %c0_11 = arith.constant 0 : index
    %13 = vector.load %arg5[%c0_9, %c0_10, %c0_11] : memref<1x128x128xbf16, #tpu.memory_space<vmem>>, vector<1x128x128xbf16>
    %14 = vector.shape_cast %13 : vector<1x128x128xbf16> to vector<128x128xbf16>
    %cst_12 = arith.constant dense<0.000000e+00> : vector<8x128xf32>
    %15 = tpu.matmul %12, %14, %cst_12 {dimension_numbers = #tpu.dot_dimension_numbers<[1], [0], [0], [1], [0, 0, 1, 1], [], []>} : vector<8x128xbf16>, vector<128x128xbf16>, vector<8x128xf32> -> vector<8x128xf32>
    %c0_13 = arith.constant 0 : index
    %c0_14 = arith.constant 0 : index
    %c0_15 = arith.constant 0 : index
    %16 = vector.load %arg6[%c0_13, %c0_14, %c0_15] : memref<1x1x128xf32, #tpu.memory_space<vmem>>, vector<1x1x128xf32>
    %17 = vector.shape_cast %16 : vector<1x1x128xf32> to vector<1x128xf32>
    %18 = vector.broadcast %17 : vector<1x128xf32> to vector<8x128xf32>
    %19 = arith.addf %15, %18 : vector<8x128xf32>
    %cst_16 = arith.constant 0.000000e+00 : f32
    %20 = vector.broadcast %cst_16 : f32 to vector<8x128xf32>
    %21 = arith.maximumf %19, %20 : vector<8x128xf32>
    %22 = arith.truncf %21 : vector<8x128xf32> to vector<8x128xbf16>
    %c0_17 = arith.constant 0 : index
    %c0_18 = arith.constant 0 : index
    %c0_19 = arith.constant 0 : index
    %23 = vector.load %arg7[%c0_17, %c0_18, %c0_19] : memref<1x128x128xbf16, #tpu.memory_space<vmem>>, vector<1x128x128xbf16>
    %24 = vector.shape_cast %23 : vector<1x128x128xbf16> to vector<128x128xbf16>
    %cst_20 = arith.constant dense<0.000000e+00> : vector<8x128xf32>
    %25 = tpu.matmul %22, %24, %cst_20 {dimension_numbers = #tpu.dot_dimension_numbers<[1], [0], [0], [1], [0, 0, 1, 1], [], []>} : vector<8x128xbf16>, vector<128x128xbf16>, vector<8x128xf32> -> vector<8x128xf32>
    %c0_21 = arith.constant 0 : index
    %c0_22 = arith.constant 0 : index
    %c0_23 = arith.constant 0 : index
    %26 = vector.load %arg8[%c0_21, %c0_22, %c0_23] : memref<1x1x128xf32, #tpu.memory_space<vmem>>, vector<1x1x128xf32>
    %27 = vector.shape_cast %26 : vector<1x1x128xf32> to vector<1x128xf32>
    %28 = vector.broadcast %27 : vector<1x128xf32> to vector<8x128xf32>
    %29 = arith.addf %25, %28 : vector<8x128xf32>
    %30 = arith.negf %29 : vector<8x128xf32>
    %31 = math.exp %30 : vector<8x128xf32>
    %cst_24 = arith.constant 1.000000e+00 : f32
    %32 = vector.broadcast %cst_24 : f32 to vector<8x128xf32>
    %33 = arith.addf %32, %31 : vector<8x128xf32>
    %34 = arith.divf %32, %33 : vector<8x128xf32>
    %c0_25 = arith.constant 0 : index
    %c0_26 = arith.constant 0 : index
    %c0_27 = arith.constant 0 : index
    %35 = vector.load %arg9[%c0_25, %c0_26, %c0_27] : memref<1x8x128xf32, #tpu.memory_space<vmem>>, vector<1x8x128xf32>
    %36 = vector.shape_cast %35 : vector<1x8x128xf32> to vector<8x128xf32>
    %37 = vector.shape_cast %34 : vector<8x128xf32> to vector<1x8x128xf32>
    tpu.vector_store %arg9[%c0_25, %c0_26, %c0_27], %37 {strides = array<i32>} : memref<1x8x128xf32, #tpu.memory_space<vmem>>, vector<1x8x128xf32>,
    return
  }
  func.func @transform_0(%arg0: i32, %arg1: i32) -> (i32, i32, i32) {
    %c0_i32 = arith.constant 0 : i32
    %c0_i32_0 = arith.constant 0 : i32
    return %arg0, %arg1, %c0_i32 : i32, i32, i32
  }
  func.func @transform_1(%arg0: i32, %arg1: i32) -> (i32, i32, i32) {
    %c0_i32 = arith.constant 0 : i32
    %c0_i32_0 = arith.constant 0 : i32
    %c0_i32_1 = arith.constant 0 : i32
    return %arg0, %c0_i32, %c0_i32_0 : i32, i32, i32
  }
  func.func @transform_2(%arg0: i32, %arg1: i32) -> (i32, i32, i32) {
    %c0_i32 = arith.constant 0 : i32
    %c0_i32_0 = arith.constant 0 : i32
    %c0_i32_1 = arith.constant 0 : i32
    return %arg0, %c0_i32, %c0_i32_0 : i32, i32, i32
  }
  func.func @transform_3(%arg0: i32, %arg1: i32) -> (i32, i32, i32) {
    %c0_i32 = arith.constant 0 : i32
    %c0_i32_0 = arith.constant 0 : i32
    %c0_i32_1 = arith.constant 0 : i32
    return %arg0, %c0_i32, %c0_i32_0 : i32, i32, i32
  }
  func.func @transform_4(%arg0: i32, %arg1: i32) -> (i32, i32, i32) {
    %c0_i32 = arith.constant 0 : i32
    %c0_i32_0 = arith.constant 0 : i32
    %c0_i32_1 = arith.constant 0 : i32
    return %arg0, %c0_i32, %c0_i32_0 : i32, i32, i32
  }
  func.func @transform_5(%arg0: i32, %arg1: i32) -> (i32, i32, i32) {
    %c0_i32 = arith.constant 0 : i32
    %c0_i32_0 = arith.constant 0 : i32
    %c0_i32_1 = arith.constant 0 : i32
    return %arg0, %c0_i32, %c0_i32_0 : i32, i32, i32
  }
  func.func @transform_6(%arg0: i32, %arg1: i32) -> (i32, i32, i32) {
    %c0_i32 = arith.constant 0 : i32
    %c0_i32_0 = arith.constant 0 : i32
    %c0_i32_1 = arith.constant 0 : i32
    return %arg0, %c0_i32, %c0_i32_0 : i32, i32, i32
  }
  func.func @transform_7(%arg0: i32, %arg1: i32) -> (i32, i32, i32) {
    %c0_i32 = arith.constant 0 : i32
    %c0_i32_0 = arith.constant 0 : i32
    return %arg0, %arg1, %c0_i32 : i32, i32, i32
  }
}

</mosaic_0001>

<llo_original>
// kernel: tpu_custom_call.1
$region0: #{tpu_custom_call.1}
  #allocation0 [shape = 'u32[]', space=smem, size = 0x4, offset = 0x4, fixed_abs, tag = 'smem constant byte address 0x4 - core index']
  #allocation1 [shape = 'u32[144,128]{1,0:T(1,128)}', space=vmem, size = 0x12000, scoped, tag = 'internal scratch']
  %s0 = inlined_call_operand.hbm [shape: f32[2,8,32], index: 0, kind: input, shape index: {}]
  %s1 = inlined_call_operand.hbm [shape: bf16[2,32,128], index: 1, kind: input, shape index: {}]
  %s2 = inlined_call_operand.vmem [shape: f32[2,1,128], index: 2, kind: input, shape index: {}]
  %s3 = inlined_call_operand.hbm [shape: bf16[2,128,128], index: 3, kind: input, shape index: {}]
  %s4 = inlined_call_operand.vmem [shape: f32[2,1,128], index: 4, kind: input, shape index: {}]
  %s5 = inlined_call_operand.hbm [shape: bf16[2,128,128], index: 5, kind: input, shape index: {}]
  %s6 = inlined_call_operand.vmem [shape: f32[2,1,128], index: 6, kind: input, shape index: {}]
  %s7 = inlined_call_operand.hbm [shape: f32[2,8,128], index: 7, kind: output, shape index: {}]
  %s8 = sld [smem:[#allocation0]]
  $region77: #{tpu_custom_call.1} parent=0
    _
  %s10 = ssub.s32 1, %s8
  %s11 = scalar_select 0, %s10, %s8
  $region1: #{tpu_custom_call.1} parent=0
    #allocation2 [shape = 'u8[8192]{0}', space=vmem, size = 0x2000, scoped, tag = 'input window, operand 0']
    #allocation3 [shape = 's32[2]{0}', space=sflag, size = 0x8, scoped, tag = 'scoped memory for tpu_custom_call.1']
    #allocation4 [shape = 's32[2]{0}', space=sflag, size = 0x8, scoped, tag = 'scoped memory for tpu_custom_call.1']
    #allocation5 [shape = 'u8[16384]{0}', space=vmem, size = 0x4000, scoped, tag = 'input window, operand 1']
    #allocation6 [shape = 's32[2]{0}', space=sflag, size = 0x8, scoped, tag = 'scoped memory for tpu_custom_call.1']
    #allocation7 [shape = 'u8[65536]{0}', space=vmem, size = 0x10000, scoped, tag = 'input window, operand 3']
    #allocation8 [shape = 'u8[65536]{0}', space=vmem, size = 0x10000, scoped, tag = 'input window, operand 5']
    #allocation9 [shape = 's32[2]{0}', space=sflag, size = 0x8, scoped, tag = 'scoped memory for tpu_custom_call.1']
    #allocation10 [shape = 'u8[8192]{0}', space=vmem, size = 0x2000, scoped, tag = 'output window, operand 0']
    %12 = vsyncpa [#allocation3], 0
    %s13 = scalar_lea.sflag [#allocation3], 1
    %14 = vsyncpa %s13, 0
    %15 = vsyncpa [#allocation6], 0
    %s16 = scalar_lea.sflag [#allocation6], 1
    %17 = vsyncpa %s16, 0
    %18 = vsyncpa [#allocation9], 0
    %s19 = scalar_lea.sflag [#allocation9], 1
    %20 = vsyncpa %s19, 0
    %21 = vsyncpa [#allocation4], 0
    %s22 = scalar_lea.sflag [#allocation4], 1
    %23 = vsyncpa %s22, 0
    loop: start=0, step=1, limit=4
    $region2: #{tpu_custom_call.1} parent=1 // loop_pre_header
      _
    $region3: #{tpu_custom_call.1} parent=1 // loop_header
      %s25 = sphi 0, %s29
      %p26 = scmp.ge.s32.totalorder %s25, 4
      %s32 = sphi 0, %s44
      %s33 = sphi 0, %s40
      %s34 = sphi 0, %s32
      %s35 = sphi 0, %s33
      %s36 = sphi 0, %s34
      %s37 = sphi 0, %s35
      %s49 = sphi 0, %s51
      %s52 = sphi 0, %s49
      %s53 = sphi 0, %s52
      %s69 = sphi 0, %s53
      %s75 = sphi 0, %s77
      %s78 = sphi 0, %s75
      %s79 = sphi 0, %s78
      %s95 = sphi 0, %s79
      %s101 = sphi 0, %s103
      %s104 = sphi 0, %s101
      %s105 = sphi 0, %s104
      %s121 = sphi 0, %s105
      %s127 = sphi 0, %s129
      %s130 = sphi 0, %s127
      %s131 = sphi 0, %s130
      %s147 = sphi 0, %s131
      %s153 = sphi 0, %s155
      %s156 = sphi 0, %s153
      %s157 = sphi 0, %s156
      %s173 = sphi 0, %s157
      %s179 = sphi 0, %s181
      %s182 = sphi 0, %s179
      %s183 = sphi 0, %s182
      %s199 = sphi 0, %s183
      %s205 = sphi 0, %s207
      %s208 = sphi 0, %s205
      %s209 = sphi 0, %s208
      %s225 = sphi 0, %s209
      %s233 = sphi 0, %s235
      %s236 = sphi 0, %s233
      %s237 = sphi 0, %s236
      %s253 = sphi 0, %s237
    $region4: #{tpu_custom_call.1} parent=1 // loop_header_branch
      %28 = sbr.rel (%p26) target = $region8
    $region5: #{tpu_custom_call.1} parent=1 // loop_body
      %s30 = ssub.s32 %s25, 1
      %s31 = ssub.s32 %s25, 2
      %s38 = sadd.s32 1, %s33
      %p39 = scmp.ge.s32.totalorder %s38, 1
      %s40 = scalar_select %p39, 0, %s38
      %s41 = sadd.s32 1, %s32
      %s42 = scalar_select %p39, %s41, %s32
      %p43 = scmp.ge.s32.totalorder %s42, 2
      %s44 = scalar_select %p43, 0, %s42
      %s45 = ssub.s32 %s32, %s44
      %s46 = ssub.s32 %s33, %s40
      %s47 = sor.u32 %s45, %s46
      %p48 = scmp.eq.s32.totalorder %s47, 0
      %s50 = sadd.s32 %s49, 1
      %s51 = scalar_select %p48, %s49, %s50
      %p54 = pneg %p48
      %p55 = scmp.eq.s32.totalorder %s25, 1
      %p56 = por %p54, %p55
      %p57 = scmp.ne.s32.totalorder %s49, %s52
      %p58 = scmp.eq.s32.totalorder %s25, 0
      %p59 = por %p57, %p58
      %p60 = scmp.ne.s32.totalorder %s49, %s52
      %p61 = scmp.eq.s32.totalorder %s30, 1
      %p62 = por %p60, %p61
      %p63 = scmp.ne.s32.totalorder %s52, %s53
      %p64 = scmp.eq.s32.totalorder %s30, 0
      %p65 = por %p63, %p64
      %p66 = scmp.ne.s32.totalorder %s52, %s53
      %p67 = scmp.eq.s32.totalorder %s31, 1
      %p68 = por %p66, %p67
      %p70 = scmp.ne.s32.totalorder %s53, %s69
      %p71 = scmp.eq.s32.totalorder %s31, 0
      %p72 = por %p70, %p71
      %s73 = ssub.s32 %s32, %s44
      %p74 = scmp.eq.s32.totalorder %s73, 0
      %s76 = sadd.s32 %s75, 1
      %s77 = scalar_select %p74, %s75, %s76
      %p80 = pneg %p74
      %p81 = scmp.eq.s32.totalorder %s25, 1
      %p82 = por %p80, %p81
      %p83 = scmp.ne.s32.totalorder %s75, %s78
      %p84 = scmp.eq.s32.totalorder %s25, 0
      %p85 = por %p83, %p84
      %p86 = scmp.ne.s32.totalorder %s75, %s78
      %p87 = scmp.eq.s32.totalorder %s30, 1
      %p88 = por %p86, %p87
      %p89 = scmp.ne.s32.totalorder %s78, %s79
      %p90 = scmp.eq.s32.totalorder %s30, 0
      %p91 = por %p89, %p90
      %p92 = scmp.ne.s32.totalorder %s78, %s79
      %p93 = scmp.eq.s32.totalorder %s31, 1
      %p94 = por %p92, %p93
      %p96 = scmp.ne.s32.totalorder %s79, %s95
      %p97 = scmp.eq.s32.totalorder %s31, 0
      %p98 = por %p96, %p97
      %s99 = ssub.s32 %s32, %s44
      %p100 = scmp.eq.s32.totalorder %s99, 0
      %s102 = sadd.s32 %s101, 1
      %s103 = scalar_select %p100, %s101, %s102
      %p106 = pneg %p100
      %p107 = scmp.eq.s32.totalorder %s25, 1
      %p108 = por %p106, %p107
      %p109 = scmp.ne.s32.totalorder %s101, %s104
      %p110 = scmp.eq.s32.totalorder %s25, 0
      %p111 = por %p109, %p110
      %p112 = scmp.ne.s32.totalorder %s101, %s104
      %p113 = scmp.eq.s32.totalorder %s30, 1
      %p114 = por %p112, %p113
      %p115 = scmp.ne.s32.totalorder %s104, %s105
      %p116 = scmp.eq.s32.totalorder %s30, 0
      %p117 = por %p115, %p116
      %p118 = scmp.ne.s32.totalorder %s104, %s105
      %p119 = scmp.eq.s32.totalorder %s31, 1
      %p120 = por %p118, %p119
      %p122 = scmp.ne.s32.totalorder %s105, %s121
      %p123 = scmp.eq.s32.totalorder %s31, 0
      %p124 = por %p122, %p123
      %s125 = ssub.s32 %s32, %s44
      %p126 = scmp.eq.s32.totalorder %s125, 0
      %s128 = sadd.s32 %s127, 1
      %s129 = scalar_select %p126, %s127, %s128
      %p132 = pneg %p126
      %p133 = scmp.eq.s32.totalorder %s25, 1
      %p134 = por %p132, %p133
      %p135 = scmp.ne.s32.totalorder %s127, %s130
      %p136 = scmp.eq.s32.totalorder %s25, 0
      %p137 = por %p135, %p136
      %p138 = scmp.ne.s32.totalorder %s127, %s130
      %p139 = scmp.eq.s32.totalorder %s30, 1
      %p140 = por %p138, %p139
      %p141 = scmp.ne.s32.totalorder %s130, %s131
      %p142 = scmp.eq.s32.totalorder %s30, 0
      %p143 = por %p141, %p142
      %p144 = scmp.ne.s32.totalorder %s130, %s131
      %p145 = scmp.eq.s32.totalorder %s31, 1
      %p146 = por %p144, %p145
      %p148 = scmp.ne.s32.totalorder %s131, %s147
      %p149 = scmp.eq.s32.totalorder %s31, 0
      %p150 = por %p148, %p149
      %s151 = ssub.s32 %s32, %s44
      %p152 = scmp.eq.s32.totalorder %s151, 0
      %s154 = sadd.s32 %s153, 1
      %s155 = scalar_select %p152, %s153, %s154
      %p158 = pneg %p152
      %p159 = scmp.eq.s32.totalorder %s25, 1
      %p160 = por %p158, %p159
      %p161 = scmp.ne.s32.totalorder %s153, %s156
      %p162 = scmp.eq.s32.totalorder %s25, 0
      %p163 = por %p161, %p162
      %p164 = scmp.ne.s32.totalorder %s153, %s156
      %p165 = scmp.eq.s32.totalorder %s30, 1
      %p166 = por %p164, %p165
      %p167 = scmp.ne.s32.totalorder %s156, %s157
      %p168 = scmp.eq.s32.totalorder %s30, 0
      %p169 = por %p167, %p168
      %p170 = scmp.ne.s32.totalorder %s156, %s157
      %p171 = scmp.eq.s32.totalorder %s31, 1
      %p172 = por %p170, %p171
      %p174 = scmp.ne.s32.totalorder %s157, %s173
      %p175 = scmp.eq.s32.totalorder %s31, 0
      %p176 = por %p174, %p175
      %s177 = ssub.s32 %s32, %s44
      %p178 = scmp.eq.s32.totalorder %s177, 0
      %s180 = sadd.s32 %s179, 1
      %s181 = scalar_select %p178, %s179, %s180
      %p184 = pneg %p178
      %p185 = scmp.eq.s32.totalorder %s25, 1
      %p186 = por %p184, %p185
      %p187 = scmp.ne.s32.totalorder %s179, %s182
      %p188 = scmp.eq.s32.totalorder %s25, 0
      %p189 = por %p187, %p188
      %p190 = scmp.ne.s32.totalorder %s179, %s182
      %p191 = scmp.eq.s32.totalorder %s30, 1
      %p192 = por %p190, %p191
      %p193 = scmp.ne.s32.totalorder %s182, %s183
      %p194 = scmp.eq.s32.totalorder %s30, 0
      %p195 = por %p193, %p194
      %p196 = scmp.ne.s32.totalorder %s182, %s183
      %p197 = scmp.eq.s32.totalorder %s31, 1
      %p198 = por %p196, %p197
      %p200 = scmp.ne.s32.totalorder %s183, %s199
      %p201 = scmp.eq.s32.totalorder %s31, 0
      %p202 = por %p200, %p201
      %s203 = ssub.s32 %s32, %s44
      %p204 = scmp.eq.s32.totalorder %s203, 0
      %s206 = sadd.s32 %s205, 1
      %s207 = scalar_select %p204, %s205, %s206
      %p210 = pneg %p204
      %p211 = scmp.eq.s32.totalorder %s25, 1
      %p212 = por %p210, %p211
      %p213 = scmp.ne.s32.totalorder %s205, %s208
      %p214 = scmp.eq.s32.totalorder %s25, 0
      %p215 = por %p213, %p214
      %p216 = scmp.ne.s32.totalorder %s205, %s208
      %p217 = scmp.eq.s32.totalorder %s30, 1
      %p218 = por %p216, %p217
      %p219 = scmp.ne.s32.totalorder %s208, %s209
      %p220 = scmp.eq.s32.totalorder %s30, 0
      %p221 = por %p219, %p220
      %p222 = scmp.ne.s32.totalorder %s208, %s209
      %p223 = scmp.eq.s32.totalorder %s31, 1
      %p224 = por %p222, %p223
      %p226 = scmp.ne.s32.totalorder %s209, %s225
      %p227 = scmp.eq.s32.totalorder %s31, 0
      %p228 = por %p226, %p227
      %s229 = ssub.s32 %s32, %s44
      %s230 = ssub.s32 %s33, %s40
      %s231 = sor.u32 %s229, %s230
      %p232 = scmp.eq.s32.totalorder %s231, 0
      %s234 = sadd.s32 %s233, 1
      %s235 = scalar_select %p232, %s233, %s234
      %p238 = pneg %p232
      %p239 = scmp.eq.s32.totalorder %s25, 1
      %p240 = por %p238, %p239
      %p241 = scmp.ne.s32.totalorder %s233, %s236
      %p242 = scmp.eq.s32.totalorder %s25, 0
      %p243 = por %p241, %p242
      %p244 = scmp.ne.s32.totalorder %s233, %s236
      %p245 = scmp.eq.s32.totalorder %s30, 1
      %p246 = por %p244, %p245
      %p247 = scmp.ne.s32.totalorder %s236, %s237
      %p248 = scmp.eq.s32.totalorder %s30, 0
      %p249 = por %p247, %p248
      %p250 = scmp.ne.s32.totalorder %s236, %s237
      %p251 = scmp.eq.s32.totalorder %s31, 1
      %p252 = por %p250, %p251
      %p254 = scmp.ne.s32.totalorder %s237, %s253
      %p255 = scmp.eq.s32.totalorder %s31, 0
      %p256 = por %p254, %p255
      %p257 = scmp.le.s32.totalorder 1, %s25
      %p258 = scmp.lt.s32.totalorder %s25, 3
      %p259 = pnand %p257, %p258
      %p260 = pneg %p259
      // Predicated region
      $region9: #{tpu_custom_call.1} parent=5 // pred_check
        _
      $region10: #{tpu_custom_call.1} parent=5 // pred_check_branch
        %262 = sbr.rel (%p259) target = $region12
      $region11: #{tpu_custom_call.1} parent=5 // pred_region
        %s263 = ssub.s32 %s25, 1
      $region12: #{tpu_custom_call.1} parent=5 // pred_fallthru
        _
      %p264 = scmp.lt.s32.totalorder %s25, 2
      // Predicated region
      $region13: #{tpu_custom_call.1} parent=5 // pred_check
        %p265 = pneg %p264
      $region14: #{tpu_custom_call.1} parent=5 // pred_check_branch
        %267 = sbr.rel (%p265) target = $region16
      $region15: #{tpu_custom_call.1} parent=5 // pred_region
        // Predicated region
        $region17: #{tpu_custom_call.1} parent=15 // pred_check
          %p268 = pneg %p59
        $region18: #{tpu_custom_call.1} parent=15 // pred_check_branch
          %270 = sbr.rel (%p268) target = $region20
        $region19: #{tpu_custom_call.1} parent=15 // pred_region
          %s271 = sand.u32 %s49, 1
          %s272 = scalar_lea.sflag [#allocation3], %s271
          %s273 = sand.u32 %s49, 1
          %s274 = smul.addr %s273, 8
          %s275 = scalar_lea.vmem [#allocation2], %s274
          %s277 = ssub.s32 128, 128
          %278 = vsyncadd %s272, %s277
          %s279 = sadd.s32 %s33, %s32
          %s280 = smul.addr %s279, 128
          %s281 = scalar_lea.hbm %s0, %s280
          %s283 = sshll.u32 %s275, 4
          %s284 = int_to_ptr.vmem [resolvable:$true] %s283
          %286 = dma.hbm_to_vmem [thread:$0]  %s281, 128, %s284, %s272
        $region20: #{tpu_custom_call.1} parent=15 // pred_fallthru
          _
        // Predicated region
        $region21: #{tpu_custom_call.1} parent=15 // pred_check
          %p287 = pneg %p85
        $region22: #{tpu_custom_call.1} parent=15 // pred_check_branch
          %289 = sbr.rel (%p287) target = $region24
        $region23: #{tpu_custom_call.1} parent=15 // pred_region
          %s290 = sand.u32 %s25, 1
          %s291 = scalar_lea.sflag [#allocation6], %s290
          %s292 = sand.u32 %s75, 1
          %s293 = smul.addr %s292, 16
          %s294 = scalar_lea.vmem [#allocation5], %s293
          %s296 = ssub.s32 256, 256
          %297 = vsyncadd %s291, %s296
          %s298 = smul.addr %s32, 4
          %s299 = smul.addr %s298, 64
          %s300 = scalar_lea.hbm %s1, %s299
          %s301 = sshll.u32 %s294, 4
          %s302 = int_to_ptr.vmem [resolvable:$true] %s301
          %307 = dma.hbm_to_vmem [thread:$0]  %s300, 256, %s302, %s291, 64, 64, 4
        $region24: #{tpu_custom_call.1} parent=15 // pred_fallthru
          _
        // Predicated region
        $region25: #{tpu_custom_call.1} parent=15 // pred_check
          %p308 = pneg %p111
        $region26: #{tpu_custom_call.1} parent=15 // pred_check_branch
          %310 = sbr.rel (%p308) target = $region28
        $region27: #{tpu_custom_call.1} parent=15 // pred_region
          %p311 = scmp.lt.s32.totalorder %s32, 1
          %s312 = scalar_select %p311, %s32, 1
          %s313 = scalar_lea.vmem %s2, %s312
        $region28: #{tpu_custom_call.1} parent=15 // pred_fallthru
          _
        // Predicated region
        $region29: #{tpu_custom_call.1} parent=15 // pred_check
          %p314 = pneg %p137
        $region30: #{tpu_custom_call.1} parent=15 // pred_check_branch
          %316 = sbr.rel (%p314) target = $region32
        $region31: #{tpu_custom_call.1} parent=15 // pred_region
          %s317 = sand.u32 %s25, 1
          %s318 = scalar_lea.sflag [#allocation6], %s317
          %s319 = sand.u32 %s127, 1
          %s320 = smul.addr %s319, 64
          %s321 = scalar_lea.vmem [#allocation7], %s320
          %s323 = ssub.s32 1024, 1024
          %324 = vsyncadd %s318, %s323
          %s325 = smul.addr %s32, 16
          %s326 = smul.addr %s325, 64
          %s327 = scalar_lea.hbm %s3, %s326
          %s328 = sshll.u32 %s321, 4
          %s329 = int_to_ptr.vmem [resolvable:$true] %s328
          %334 = dma.hbm_to_vmem [thread:$0]  %s327, 1024, %s329, %s318, 64, 64, 4
        $region32: #{tpu_custom_call.1} parent=15 // pred_fallthru
          _
        // Predicated region
        $region33: #{tpu_custom_call.1} parent=15 // pred_check
          %p335 = pneg %p163
        $region34: #{tpu_custom_call.1} parent=15 // pred_check_branch
          %337 = sbr.rel (%p335) target = $region36
        $region35: #{tpu_custom_call.1} parent=15 // pred_region
          %p338 = scmp.lt.s32.totalorder %s32, 1
          %s339 = scalar_select %p338, %s32, 1
          %s340 = scalar_lea.vmem %s4, %s339
        $region36: #{tpu_custom_call.1} parent=15 // pred_fallthru
          _
        // Predicated region
        $region37: #{tpu_custom_call.1} parent=15 // pred_check
          %p341 = pneg %p189
        $region38: #{tpu_custom_call.1} parent=15 // pred_check_branch
          %343 = sbr.rel (%p341) target = $region40
        $region39: #{tpu_custom_call.1} parent=15 // pred_region
          %s344 = sand.u32 %s179, 1
          %s345 = scalar_lea.sflag [#allocation9], %s344
          %s346 = sand.u32 %s179, 1
          %s347 = smul.addr %s346, 64
          %s348 = scalar_lea.vmem [#allocation8], %s347
          %s350 = ssub.s32 1024, 1024
          %351 = vsyncadd %s345, %s350
          %s352 = smul.addr %s32, 16
          %s353 = smul.addr %s352, 64
          %s354 = scalar_lea.hbm %s5, %s353
          %s355 = sshll.u32 %s348, 4
          %s356 = int_to_ptr.vmem [resolvable:$true] %s355
          %361 = dma.hbm_to_vmem [thread:$0]  %s354, 1024, %s356, %s345, 64, 64, 4
        $region40: #{tpu_custom_call.1} parent=15 // pred_fallthru
          _
        // Predicated region
        $region41: #{tpu_custom_call.1} parent=15 // pred_check
          %p362 = pneg %p215
        $region42: #{tpu_custom_call.1} parent=15 // pred_check_branch
          %364 = sbr.rel (%p362) target = $region44
        $region43: #{tpu_custom_call.1} parent=15 // pred_region
          %p365 = scmp.lt.s32.totalorder %s32, 1
          %s366 = scalar_select %p365, %s32, 1
          %s367 = scalar_lea.vmem %s6, %s366
        $region44: #{tpu_custom_call.1} parent=15 // pred_fallthru
          _
      $region16: #{tpu_custom_call.1} parent=5 // pred_fallthru
        _
      %p368 = scmp.le.s32.totalorder 1, %s25
      %p369 = scmp.lt.s32.totalorder %s25, 3
      %p370 = pnand %p368, %p369
      %p371 = pneg %p370
      // Predicated region
      $region45: #{tpu_custom_call.1} parent=5 // pred_check
        _
      $region46: #{tpu_custom_call.1} parent=5 // pred_check_branch
        %373 = sbr.rel (%p370) target = $region48
      $region47: #{tpu_custom_call.1} parent=5 // pred_region
        %s374 = ssub.s32 %s25, 1
        %s375 = sand.u32 %s52, 1
        %s376 = scalar_lea.sflag [#allocation3], %s375
        %s377 = sand.u32 %s52, 1
        %s378 = smul.addr %s377, 8
        %s379 = scalar_lea.vmem [#allocation2], %s378
        // Predicated region
        $region49: #{tpu_custom_call.1} parent=47 // pred_check
          %p380 = pneg %p65
        $region50: #{tpu_custom_call.1} parent=47 // pred_check_branch
          %382 = sbr.rel (%p380) target = $region52
        $region51: #{tpu_custom_call.1} parent=47 // pred_region
          %383 = dma.done %s376, 128
        $region52: #{tpu_custom_call.1} parent=47 // pred_fallthru
          _
        %s384 = sand.u32 %s30, 1
        %s385 = scalar_lea.sflag [#allocation6], %s384
        %s386 = sand.u32 %s78, 1
        %s387 = smul.addr %s386, 16
        %s388 = scalar_lea.vmem [#allocation5], %s387
        // Predicated region
        $region53: #{tpu_custom_call.1} parent=47 // pred_check
          %p389 = pneg %p91
        $region54: #{tpu_custom_call.1} parent=47 // pred_check_branch
          %391 = sbr.rel (%p389) target = $region56
        $region55: #{tpu_custom_call.1} parent=47 // pred_region
          %392 = dma.done %s385, 256
        $region56: #{tpu_custom_call.1} parent=47 // pred_fallthru
          _
        %s393 = sand.u32 %s30, 1
        %s394 = scalar_lea.sflag [#allocation6], %s393
        %s395 = sand.u32 %s130, 1
        %s396 = smul.addr %s395, 64
        %s397 = scalar_lea.vmem [#allocation7], %s396
        // Predicated region
        $region57: #{tpu_custom_call.1} parent=47 // pred_check
          %p398 = pneg %p143
        $region58: #{tpu_custom_call.1} parent=47 // pred_check_branch
          %400 = sbr.rel (%p398) target = $region60
        $region59: #{tpu_custom_call.1} parent=47 // pred_region
          %401 = dma.done %s394, 1024
        $region60: #{tpu_custom_call.1} parent=47 // pred_fallthru
          _
        %s402 = sand.u32 %s182, 1
        %s403 = scalar_lea.sflag [#allocation9], %s402
        %s404 = sand.u32 %s182, 1
        %s405 = smul.addr %s404, 64
        %s406 = scalar_lea.vmem [#allocation8], %s405
        // Predicated region
        $region61: #{tpu_custom_call.1} parent=47 // pred_check
          %p407 = pneg %p195
        $region62: #{tpu_custom_call.1} parent=47 // pred_check_branch
          %409 = sbr.rel (%p407) target = $region64
        $region63: #{tpu_custom_call.1} parent=47 // pred_region
          %410 = dma.done %s403, 1024
        $region64: #{tpu_custom_call.1} parent=47 // pred_fallthru
          _
        %s411 = sand.u32 %s52, 1
        %s412 = scalar_lea.sflag [#allocation3], %s411
        %s413 = sand.u32 %s52, 1
        %s414 = smul.addr %s413, 8
        %s415 = scalar_lea.vmem [#allocation2], %s414
        %p416 = pneg %p65
        %p417 = pneg %p62
        %s418 = sand.u32 %s30, 1
        %s419 = scalar_lea.sflag [#allocation6], %s418
        %s420 = sand.u32 %s78, 1
        %s421 = smul.addr %s420, 16
        %s422 = scalar_lea.vmem [#allocation5], %s421
        %p423 = pneg %p91
        %p424 = pneg %p88
        %p425 = scmp.lt.s32.totalorder %s34, 1
        %s426 = scalar_select %p425, %s34, 1
        %s427 = scalar_lea.vmem %s2, %s426
        %p428 = pneg %p117
        %p429 = pneg %p114
        %s430 = sand.u32 %s30, 1
        %s431 = scalar_lea.sflag [#allocation6], %s430
        %s432 = sand.u32 %s130, 1
        %s433 = smul.addr %s432, 64
        %s434 = scalar_lea.vmem [#allocation7], %s433
        %p435 = pneg %p143
        %p436 = pneg %p140
        %p437 = scmp.lt.s32.totalorder %s34, 1
        %s438 = scalar_select %p437, %s34, 1
        %s439 = scalar_lea.vmem %s4, %s438
        %p440 = pneg %p169
        %p441 = pneg %p166
        %s442 = sand.u32 %s182, 1
        %s443 = scalar_lea.sflag [#allocation9], %s442
        %s444 = sand.u32 %s182, 1
        %s445 = smul.addr %s444, 64
        %s446 = scalar_lea.vmem [#allocation8], %s445
        %p447 = pneg %p195
        %p448 = pneg %p192
        %p449 = scmp.lt.s32.totalorder %s34, 1
        %s450 = scalar_select %p449, %s34, 1
        %s451 = scalar_lea.vmem %s6, %s450
        %p452 = pneg %p221
        %p453 = pneg %p218
        %p454 = pneg %p249
        %p455 = pneg %p246
        %s456 = sand.u32 %s236, 1
        %s457 = scalar_lea.sflag [#allocation4], %s456
        %s458 = sand.u32 %s236, 1
        %s459 = smul.addr %s458, 8
        %s460 = scalar_lea.vmem [#allocation10], %s459
        %p461 = scmp.lt.s32.totalorder %s34, 1
        %s462 = scalar_select %p461, %s34, 1
        %s463 = scalar_lea.vmem %s2, %s462
        %p464 = scmp.lt.s32.totalorder %s34, 1
        %s465 = scalar_select %p464, %s34, 1
        %s466 = scalar_lea.vmem %s4, %s465
        %p467 = scmp.lt.s32.totalorder %s34, 1
        %s468 = scalar_select %p467, %s34, 1
        %s469 = scalar_lea.vmem %s6, %s468
        %v471 = vld [vmem:[%s379] sm:$0xff]
        %v472 = vpack.c.bf16 %v471, %v471
        %v473 = vld [vmem:[%s388] sm:$0xf]
        %v474 = vld [vmem:[%s388 + $0x4] sm:$0xf]
        %v475 = vld [vmem:[%s388 + $0x8] sm:$0xf]
        %v476 = vld [vmem:[%s388 + $0xc] sm:$0xf]
        %v477 = vld [vmem:[%s463] sm:$0x1]
        %v479 = vlaneseq
        %v480 = vshrl.u32 %v479, 7
        %v481 = vsub.s32 0, %v480
        %v482 = vrot.slane %v477, %v481
        %v488 = vunpack.c.l.b16 %v473
        %v489 = vunpack.c.l.b16 %v474
        %v490 = vunpack.c.l.b16 %v475
        %v491 = vunpack.c.l.b16 %v476
        %v492 = vpack.c.b16 %v489, %v488
        %v493 = vpack.c.b16 %v491, %v490
        %vm496 = vcmask 261120
        %v498 = vsel %vm496, %v472, 0
        %500 = vmatprep.subr.bf16.mxu0 0
        %501 = vmatpush1.bf16.msra.mxu0 %v492
        %502 = vmatprep.subr.bf16.mxu0 0
        %503 = vmatpush1.bf16.msra.mxu0 %v493
        %504 = vmatprep.subr.bf16.mxu0 0
        %505 = vmatpush1.bf16.msra.mxu0 0
        %506 = vmatprep.subr.bf16.mxu0 0
        %507 = vmatpush1.bf16.msra.mxu0 0
        %508 = vmatprep.subr.bf16.mxu0 0
        %509 = vmatpush1.bf16.msra.mxu0 0
        %510 = vmatprep.subr.bf16.mxu0 0
        %511 = vmatpush1.bf16.msra.mxu0 0
        %512 = vmatprep.subr.bf16.mxu0 0
        %513 = vmatpush1.bf16.msra.mxu0 0
        %514 = vmatprep.subr.bf16.mxu0 0
        %515 = vmatpush1.bf16.msra.mxu0 0
        %516 = vmatprep.subr.bf16.mxu0 0
        %517 = vmatpush1.bf16.msra.mxu0 0
        %518 = vmatprep.subr.bf16.mxu0 0
        %519 = vmatpush1.bf16.msra.mxu0 0
        %520 = vmatprep.subr.bf16.mxu0 0
        %521 = vmatpush1.bf16.msra.mxu0 0
        %522 = vmatprep.subr.bf16.mxu0 0
        %523 = vmatpush1.bf16.msra.mxu0 0
        %524 = vmatprep.subr.bf16.mxu0 0
        %525 = vmatpush1.bf16.msra.mxu0 0
        %526 = vmatprep.subr.bf16.mxu0 0
        %527 = vmatpush1.bf16.msra.mxu0 0
        %528 = vmatprep.subr.bf16.mxu0 0
        %529 = vmatpush1.bf16.msra.mxu0 0
        %530 = vmatprep.subr.bf16.mxu0 0
        %531 = vmatpush1.bf16.msra.mxu0 0
        %532 = vmatprep.mubr.bf16.mxu0 0
        %533 = vmatmul.mubr.bf16.gmra.mrb[0].mxu0 %v498
        %v534 = vpop.f32.mrb[0].mxu0
        %v535 = vadd.f32 %v482, %v534
        %v536 = vpop.f32.mrb[0].mxu0
        %v537 = vpop.f32.mrb[0].mxu0
        %v538 = vpop.f32.mrb[0].mxu0
        %539 = vdwg.mxu0
        %v540 = vmax.f32 %v535, 0.0
        %v541 = vpack.c.bf16 %v540, %v540
        %v542 = vld [vmem:[%s397] sm:$0xf]
        %v543 = vld [vmem:[%s397 + $0x4] sm:$0xf]
        %v544 = vld [vmem:[%s397 + $0x8] sm:$0xf]
        %v545 = vld [vmem:[%s397 + $0xc] sm:$0xf]
        %v546 = vld [vmem:[%s397 + $0x10] sm:$0xf]
        %v547 = vld [vmem:[%s397 + $0x14] sm:$0xf]
        %v548 = vld [vmem:[%s397 + $0x18] sm:$0xf]
        %v549 = vld [vmem:[%s397 + $0x1c] sm:$0xf]
        %v550 = vld [vmem:[%s397 + $0x20] sm:$0xf]
        %v551 = vld [vmem:[%s397 + $0x24] sm:$0xf]
        %v552 = vld [vmem:[%s397 + $0x28] sm:$0xf]
        %v553 = vld [vmem:[%s397 + $0x2c] sm:$0xf]
        %v554 = vld [vmem:[%s397 + $0x30] sm:$0xf]
        %v555 = vld [vmem:[%s397 + $0x34] sm:$0xf]
        %v556 = vld [vmem:[%s397 + $0x38] sm:$0xf]
        %v557 = vld [vmem:[%s397 + $0x3c] sm:$0xf]
        %v558 = vld [vmem:[%s466] sm:$0x1]
        %v560 = vlaneseq
        %v561 = vshrl.u32 %v560, 7
        %v562 = vsub.s32 0, %v561
        %v563 = vrot.slane %v558, %v562
        %v581 = vunpack.c.l.b16 %v542
        %v582 = vunpack.c.l.b16 %v543
        %v583 = vunpack.c.l.b16 %v544
        %v584 = vunpack.c.l.b16 %v545
        %v585 = vunpack.c.l.b16 %v546
        %v586 = vunpack.c.l.b16 %v547
        %v587 = vunpack.c.l.b16 %v548
        %v588 = vunpack.c.l.b16 %v549
        %v589 = vunpack.c.l.b16 %v550
        %v590 = vunpack.c.l.b16 %v551
        %v591 = vunpack.c.l.b16 %v552
        %v592 = vunpack.c.l.b16 %v553
        %v593 = vunpack.c.l.b16 %v554
        %v594 = vunpack.c.l.b16 %v555
        %v595 = vunpack.c.l.b16 %v556
        %v596 = vunpack.c.l.b16 %v557
        %v597 = vpack.c.b16 %v582, %v581
        %v598 = vpack.c.b16 %v584, %v583
        %v599 = vpack.c.b16 %v586, %v585
        %v600 = vpack.c.b16 %v588, %v587
        %v601 = vpack.c.b16 %v590, %v589
        %v602 = vpack.c.b16 %v592, %v591
        %v603 = vpack.c.b16 %v594, %v593
        %v604 = vpack.c.b16 %v596, %v595
        %613 = vmatprep.subr.bf16.mxu0 0
        %614 = vmatpush1.bf16.msra.mxu0 %v597
        %615 = vmatprep.subr.bf16.mxu0 0
        %616 = vmatpush1.bf16.msra.mxu0 %v598
        %617 = vmatprep.subr.bf16.mxu0 0
        %618 = vmatpush1.bf16.msra.mxu0 %v599
        %619 = vmatprep.subr.bf16.mxu0 0
        %620 = vmatpush1.bf16.msra.mxu0 %v600
        %621 = vmatprep.subr.bf16.mxu0 0
        %622 = vmatpush1.bf16.msra.mxu0 %v601
        %623 = vmatprep.subr.bf16.mxu0 0
        %624 = vmatpush1.bf16.msra.mxu0 %v602
        %625 = vmatprep.subr.bf16.mxu0 0
        %626 = vmatpush1.bf16.msra.mxu0 %v603
        %627 = vmatprep.subr.bf16.mxu0 0
        %628 = vmatpush1.bf16.msra.mxu0 %v604
        %629 = vmatprep.subr.bf16.mxu0 0
        %630 = vmatpush1.bf16.msra.mxu0 0
        %631 = vmatprep.subr.bf16.mxu0 0
        %632 = vmatpush1.bf16.msra.mxu0 0
        %633 = vmatprep.subr.bf16.mxu0 0
        %634 = vmatpush1.bf16.msra.mxu0 0
        %635 = vmatprep.subr.bf16.mxu0 0
        %636 = vmatpush1.bf16.msra.mxu0 0
        %637 = vmatprep.subr.bf16.mxu0 0
        %638 = vmatpush1.bf16.msra.mxu0 0
        %639 = vmatprep.subr.bf16.mxu0 0
        %640 = vmatpush1.bf16.msra.mxu0 0
        %641 = vmatprep.subr.bf16.mxu0 0
        %642 = vmatpush1.bf16.msra.mxu0 0
        %643 = vmatprep.subr.bf16.mxu0 0
        %644 = vmatpush1.bf16.msra.mxu0 0
        %645 = vmatprep.mubr.bf16.mxu0 0
        %646 = vmatmul.mubr.bf16.gmra.mrb[0].mxu0 %v541
        %v647 = vpop.f32.mrb[0].mxu0
        %v648 = vadd.f32 %v563, %v647
        %v649 = vpop.f32.mrb[0].mxu0
        %v650 = vpop.f32.mrb[0].mxu0
        %v651 = vpop.f32.mrb[0].mxu0
        %652 = vdwg.mxu0
        %v653 = vmax.f32 %v648, 0.0
        %v654 = vpack.c.bf16 %v653, %v653
        %v655 = vld [vmem:[%s406] sm:$0xf]
        %v656 = vld [vmem:[%s406 + $0x4] sm:$0xf]
        %v657 = vld [vmem:[%s406 + $0x8] sm:$0xf]
        %v658 = vld [vmem:[%s406 + $0xc] sm:$0xf]
        %v659 = vld [vmem:[%s406 + $0x10] sm:$0xf]
        %v660 = vld [vmem:[%s406 + $0x14] sm:$0xf]
        %v661 = vld [vmem:[%s406 + $0x18] sm:$0xf]
        %v662 = vld [vmem:[%s406 + $0x1c] sm:$0xf]
        %v663 = vld [vmem:[%s406 + $0x20] sm:$0xf]
        %v664 = vld [vmem:[%s406 + $0x24] sm:$0xf]
        %v665 = vld [vmem:[%s406 + $0x28] sm:$0xf]
        %v666 = vld [vmem:[%s406 + $0x2c] sm:$0xf]
        %v667 = vld [vmem:[%s406 + $0x30] sm:$0xf]
        %v668 = vld [vmem:[%s406 + $0x34] sm:$0xf]
        %v669 = vld [vmem:[%s406 + $0x38] sm:$0xf]
        %v670 = vld [vmem:[%s406 + $0x3c] sm:$0xf]
        %v671 = vld [vmem:[%s469] sm:$0x1]
        %v673 = vlaneseq
        %v674 = vshrl.u32 %v673, 7
        %v675 = vsub.s32 0, %v674
        %v676 = vrot.slane %v671, %v675
        %v694 = vunpack.c.l.b16 %v655
        %v695 = vunpack.c.l.b16 %v656
        %v696 = vunpack.c.l.b16 %v657
        %v697 = vunpack.c.l.b16 %v658
        %v698 = vunpack.c.l.b16 %v659
        %v699 = vunpack.c.l.b16 %v660
        %v700 = vunpack.c.l.b16 %v661
        %v701 = vunpack.c.l.b16 %v662
        %v702 = vunpack.c.l.b16 %v663
        %v703 = vunpack.c.l.b16 %v664
        %v704 = vunpack.c.l.b16 %v665
        %v705 = vunpack.c.l.b16 %v666
        %v706 = vunpack.c.l.b16 %v667
        %v707 = vunpack.c.l.b16 %v668
        %v708 = vunpack.c.l.b16 %v669
        %v709 = vunpack.c.l.b16 %v670
        %v710 = vpack.c.b16 %v695, %v694
        %v711 = vpack.c.b16 %v697, %v696
        %v712 = vpack.c.b16 %v699, %v698
        %v713 = vpack.c.b16 %v701, %v700
        %v714 = vpack.c.b16 %v703, %v702
        %v715 = vpack.c.b16 %v705, %v704
        %v716 = vpack.c.b16 %v707, %v706
        %v717 = vpack.c.b16 %v709, %v708
        %726 = vmatprep.subr.bf16.mxu0 0
        %727 = vmatpush1.bf16.msra.mxu0 %v710
        %728 = vmatprep.subr.bf16.mxu0 0
        %729 = vmatpush1.bf16.msra.mxu0 %v711
        %730 = vmatprep.subr.bf16.mxu0 0
        %731 = vmatpush1.bf16.msra.mxu0 %v712
        %732 = vmatprep.subr.bf16.mxu0 0
        %733 = vmatpush1.bf16.msra.mxu0 %v713
        %734 = vmatprep.subr.bf16.mxu0 0
        %735 = vmatpush1.bf16.msra.mxu0 %v714
        %736 = vmatprep.subr.bf16.mxu0 0
        %737 = vmatpush1.bf16.msra.mxu0 %v715
        %738 = vmatprep.subr.bf16.mxu0 0
        %739 = vmatpush1.bf16.msra.mxu0 %v716
        %740 = vmatprep.subr.bf16.mxu0 0
        %741 = vmatpush1.bf16.msra.mxu0 %v717
        %742 = vmatprep.subr.bf16.mxu0 0
        %743 = vmatpush1.bf16.msra.mxu0 0
        %744 = vmatprep.subr.bf16.mxu0 0
        %745 = vmatpush1.bf16.msra.mxu0 0
        %746 = vmatprep.subr.bf16.mxu0 0
        %747 = vmatpush1.bf16.msra.mxu0 0
        %748 = vmatprep.subr.bf16.mxu0 0
        %749 = vmatpush1.bf16.msra.mxu0 0
        %750 = vmatprep.subr.bf16.mxu0 0
        %751 = vmatpush1.bf16.msra.mxu0 0
        %752 = vmatprep.subr.bf16.mxu0 0
        %753 = vmatpush1.bf16.msra.mxu0 0
        %754 = vmatprep.subr.bf16.mxu0 0
        %755 = vmatpush1.bf16.msra.mxu0 0
        %756 = vmatprep.subr.bf16.mxu0 0
        %757 = vmatpush1.bf16.msra.mxu0 0
        %758 = vmatprep.mubr.bf16.mxu0 0
        %759 = vmatmul.mubr.bf16.gmra.mrb[0].mxu0 %v654
        %v760 = vpop.f32.mrb[0].mxu0
        %v761 = vadd.f32 %v676, %v760
        %v762 = vpop.f32.mrb[0].mxu0
        %v763 = vpop.f32.mrb[0].mxu0
        %v764 = vpop.f32.mrb[0].mxu0
        %765 = vdwg.mxu0
        %v766 = vxor.u32 %v761, 2147483648
        %v767 = vmul.f32 %v766, 1.442695
        %v768 = vpow.pop %v767
        %v769 = vadd.f32 %v768, 1.0
        %v770 = vrcp.pop %v769
        %v771 = vmul.f32 1.0, %v770
        %772 = vst [vmem:[%s460] sm:$0xff] %v771
        %s773 = sand.u32 %s236, 1
        %s774 = scalar_lea.sflag [#allocation4], %s773
        %s775 = sand.u32 %s236, 1
        %s776 = smul.addr %s775, 8
        %s777 = scalar_lea.vmem [#allocation10], %s776
        // Predicated region
        $region65: #{tpu_custom_call.1} parent=47 // pred_check
          %p778 = pneg %p246
        $region66: #{tpu_custom_call.1} parent=47 // pred_check_branch
          %780 = sbr.rel (%p778) target = $region68
        $region67: #{tpu_custom_call.1} parent=47 // pred_region
          %s782 = ssub.s32 128, 128
          %783 = vsyncadd %s774, %s782
          %s784 = sadd.s32 %s35, %s34
          %s785 = smul.addr %s784, 128
          %s786 = scalar_lea.hbm %s7, %s785
          %s788 = sshll.u32 %s777, 4
          %s789 = int_to_ptr.vmem [resolvable:$true] %s788
          %791 = dma.vmem_to_hbm [thread:$0]  %s789, 128, %s786, %s774
        $region68: #{tpu_custom_call.1} parent=47 // pred_fallthru
          _
      $region48: #{tpu_custom_call.1} parent=5 // pred_fallthru
        _
      %p792 = scmp.le.s32.totalorder 2, %s25
      // Predicated region
      $region69: #{tpu_custom_call.1} parent=5 // pred_check
        %p793 = pneg %p792
      $region70: #{tpu_custom_call.1} parent=5 // pred_check_branch
        %795 = sbr.rel (%p793) target = $region72
      $region71: #{tpu_custom_call.1} parent=5 // pred_region
        %s796 = ssub.s32 %s25, 2
        // Predicated region
        $region73: #{tpu_custom_call.1} parent=71 // pred_check
          %p797 = pneg %p252
        $region74: #{tpu_custom_call.1} parent=71 // pred_check_branch
          %799 = sbr.rel (%p797) target = $region76
        $region75: #{tpu_custom_call.1} parent=71 // pred_region
          %s800 = sand.u32 %s237, 1
          %s801 = scalar_lea.sflag [#allocation4], %s800
          %s802 = sand.u32 %s237, 1
          %s803 = smul.addr %s802, 8
          %s804 = scalar_lea.vmem [#allocation10], %s803
          %805 = dma.done %s801, 128
        $region76: #{tpu_custom_call.1} parent=71 // pred_fallthru
          _
      $region72: #{tpu_custom_call.1} parent=5 // pred_fallthru
        _
    $region6: #{tpu_custom_call.1} parent=1 // loop_footer
      %s29 = sadd.s32 1, %s25
    $region7: #{tpu_custom_call.1} parent=1 // loop_footer_branch
      %24 = sbr.rel target = $region3
    $region8: #{tpu_custom_call.1} parent=1 // loop_exit
      _
    %806 = vsyncpa [#allocation3], 1
    %s807 = scalar_lea.sflag [#allocation3], 1
    %808 = vsyncpa %s807, 1
    %809 = vsyncpa [#allocation6], 1
    %s810 = scalar_lea.sflag [#allocation6], 1
    %811 = vsyncpa %s810, 1
    %812 = vsyncpa [#allocation9], 1
    %s813 = scalar_lea.sflag [#allocation9], 1
    %814 = vsyncpa %s813, 1
    %815 = vsyncpa [#allocation4], 1
    %s816 = scalar_lea.sflag [#allocation4], 1
    %817 = vsyncpa %s816, 1

</llo_original>
